<compile_context>
chip_gen: v5e
topology: v5e:2x2
jax: 0.10.0
libtpu: 0.0.40
codegen_flags: <defaults>
</compile_context>

<pallas_src>
import functools

import jax
import jax.numpy as jnp
from jax import lax
from jax.experimental import pallas as pl
from jax.experimental.pallas import tpu as pltpu

EPS = 1e-12  # F.normalize default eps


def _cos_head_kernel(z_ref, w_ref, o_ref, acc_ref, zss_ref, wss_ref, *, s):
    i = pl.program_id(1)                 # batch-tile index
    k = pl.program_id(2)                 # feature-tile (reduction) index
    nk = pl.num_programs(2)

    @pl.when(k == 0)
    def _init():
        acc_ref[...] = jnp.zeros_like(acc_ref)
        zss_ref[...] = jnp.zeros_like(zss_ref)

    @pl.when(jnp.logical_and(k == 0, i == 0))
    def _init_w():
        wss_ref[...] = jnp.zeros_like(wss_ref)

    z = z_ref[...]                       # [tm, tk], original dtype (MXU operand)
    w = w_ref[...]                       # [tn, tk], original dtype (MXU operand)

    zf = z.astype(jnp.float32)
    ones_k = jnp.ones((1, z.shape[1]), dtype=jnp.float32)

    # ||z_row||^2 partials (f32): small tile, plain reduce.
    zss_ref[...] += jnp.sum(zf * zf, axis=-1, keepdims=True)      # [tm, 1]

    # ||w_row||^2 partials via a tiny MXU contraction -> lane-major [1, tn].
    # Only computed on the first batch tile; persistent scratch is reused for
    # every later batch tile of the same class tile (i axis is "arbitrary").
    @pl.when(i == 0)
    def _w_norms():
        wf = w.astype(jnp.float32)
        wss_ref[...] += lax.dot_general(
            ones_k, wf * wf,
            dimension_numbers=(((1,), (1,)), ((), ())),
            preferred_element_type=jnp.float32)                   # [1, tn]

    # G += z @ w.T, contracting the lane axis of both operands (no vxpose).
    acc_ref[...] += lax.dot_general(
        z, w,
        dimension_numbers=(((1,), (1,)), ((), ())),
        preferred_element_type=jnp.float32)

    @pl.when(k == nk - 1)
    def _finalize():
        # x * rsqrt(max(||x||^2, eps^2)) == x / max(||x||, eps)  (F.normalize)
        inv_z = lax.rsqrt(jnp.maximum(zss_ref[...], EPS * EPS))   # [tm, 1]
        inv_w = lax.rsqrt(jnp.maximum(wss_ref[...], EPS * EPS))   # [1, tn]
        o_ref[...] = ((s * inv_z) * acc_ref[...] * inv_w).astype(o_ref.dtype)


def _round_up(x, m):
    return (x + m - 1) // m * m


def _largest_divisor(total, align, cap):
    """Largest multiple of `align` that divides `total` and is <= cap."""
    cap = max(align, min(cap, total))
    best = align
    d = align
    while d <= cap:
        if total % d == 0:
            best = d
        d += align
    return best


def clf_cos_forward(z, weight, s, *, tm=None, tn=None, tk=None,
                    vmem_budget_bytes=44 * 1024 * 1024):
    """z: [B, D], weight: [C, D] -> logits [B, C] = s * cos(z, w)."""
    B, D = z.shape
    C, Dw = weight.shape
    assert D == Dw, "feature dims must match"
    if weight.dtype != z.dtype:          # explicit cast policy for mixed dtypes
        weight = weight.astype(z.dtype)
    itemsize = jnp.dtype(z.dtype).itemsize

    # Pad only to hardware granularity (8 sublanes / 128 lanes); tiles are
    # chosen as divisors of these, so no extra dead columns are streamed.
    pB = _round_up(B, 8)
    pC = _round_up(C, 128)
    pD = _round_up(D, 128)

    # --- tile selection -----------------------------------------------------
    if tk is None:
        # Grow the reduction tile first: fewer K steps -> fewer accumulator
        # read-modify-write passes and less per-step overhead.
        tk = _largest_divisor(pD, 128, 2048)
    if tn is None:
        # Weight tile per pipeline buffer capped at ~8 MiB (v7x-safe).
        tn_cap = max(128, (8 * 1024 * 1024) // (tk * itemsize))
        tn = _largest_divisor(pC, 128, min(2048, tn_cap))
        # Keep >= 2 class tiles when possible so the 2nd TensorCore (v7x) has
        # work on the "parallel" j axis.
        if pC // tn == 1 and pC >= 256:
            tn = _largest_divisor(pC, 128, pC // 2)
    if tm is None:
        # Spend the remaining VMEM budget on the batch tile (cuts weight
        # re-reads for large B).
        w_bytes = 2 * tn * tk * itemsize
        per_row = 2 * tk * itemsize + 2 * tn * itemsize + tn * 4
        tm_cap = max(8, (vmem_budget_bytes - w_bytes) // per_row)
        tm = _largest_divisor(pB, 8, min(1024, tm_cap))

    # If explicit (non-divisor) tiles were passed, fall back to padding up.
    pB = _round_up(pB, tm)
    pC = _round_up(pC, tn)
    pD = _round_up(pD, tk)

    zp = z if (pB == B and pD == D) else jnp.pad(z, ((0, pB - B), (0, pD - D)))
    wp = weight if (pC == C and pD == D) else jnp.pad(
        weight, ((0, pC - C), (0, pD - D)))

    vmem_need = (2 * tm * tk * itemsize          # z double-buffer
                 + 2 * tn * tk * itemsize        # w double-buffer
                 + 2 * tm * tn * itemsize        # out double-buffer
                 + tm * tn * 4                   # f32 accumulator
                 + (tm + tn) * 4 * 8)            # norm scratches (padded)
    vmem_limit = int(min(max(vmem_need + (8 << 20), 32 << 20), 56 << 20))

    grid = (pC // tn, pB // tm, pD // tk)        # (j, i, k), reduction last
    kernel = functools.partial(_cos_head_kernel, s=float(s))

    out = pl.pallas_call(
        kernel,
        out_shape=jax.ShapeDtypeStruct((pB, pC), z.dtype),
        grid_spec=pltpu.PrefetchScalarGridSpec(
            num_scalar_prefetch=0,
            grid=grid,
            in_specs=[
                pl.BlockSpec((tm, tk), lambda j, i, k: (i, k)),   # z
                pl.BlockSpec((tn, tk), lambda j, i, k: (j, k)),   # weight
            ],
            out_specs=pl.BlockSpec((tm, tn), lambda j, i, k: (i, j)),
            scratch_shapes=[
                pltpu.VMEM((tm, tn), jnp.float32),   # dot accumulator
                pltpu.VMEM((tm, 1), jnp.float32),    # ||z_row||^2 partials
                pltpu.VMEM((1, tn), jnp.float32),    # ||w_row||^2 (lane-major)
            ],
        ),
        compiler_params=pltpu.CompilerParams(
            # i must be "arbitrary": weight norms are hoisted across batch
            # tiles, so the batch axis may not be megacore-sharded.
            dimension_semantics=("parallel", "arbitrary", "arbitrary"),
            vmem_limit_bytes=vmem_limit),
    )(zp, wp)

    return out[:B, :C]


def xavier_uniform(key, shape, dtype=jnp.float32):
    # nn.init.xavier_uniform_ for a 2-D weight [fan_out, fan_in]
    fan_out, fan_in = shape
    limit = (6.0 / (fan_in + fan_out)) ** 0.5
    return jax.random.uniform(key, shape, dtype, minval=-limit, maxval=limit)


def _reference(z, weight, s):
    z_hat = z / jnp.maximum(jnp.linalg.norm(z, axis=-1, keepdims=True), EPS)
    w_hat = weight / jnp.maximum(
        jnp.linalg.norm(weight, axis=-1, keepdims=True), EPS)
    return s * (z_hat @ w_hat.T)


if __name__ == "__main__":
    key = jax.random.PRNGKey(0)
    kz1, kw1, kz2, kw2 = jax.random.split(key, 4)

    # Case 1: module-sized problem (args.out_dim = 32 features, 16 classes, s=30).
    B, D, C, s = 8, 32, 16, 30.0
    z1 = jax.random.normal(kz1, (B, D), dtype=jnp.float32)
    w1 = xavier_uniform(kw1, (C, D))
    logits1 = clf_cos_forward(z1, w1, s)
    jax.block_until_ready(logits1)
    assert logits1.shape == (B, C)
    assert jnp.allclose(logits1, _reference(z1, w1, s), atol=1e-4, rtol=1e-4)

    # Case 2: exercises C padding (192 -> 256), a 2-block class (j) axis, the
    # tiled-D reduction (tk=128 -> 2 accumulation steps) and the hoisted
    # weight-norm path.
    B2, D2, C2 = 16, 256, 192
    z2 = jax.random.normal(kz2, (B2, D2), dtype=jnp.float32)
    w2 = xavier_uniform(kw2, (C2, D2))
    logits2 = clf_cos_forward(z2, w2, s, tk=128)
    jax.block_until_ready(logits2)
    assert logits2.shape == (B2, C2)
    assert jnp.allclose(logits2, _reference(z2, w2, s), atol=1e-4, rtol=1e-4)

    print("KERNEL_OK")
</pallas_src>

<mosaic_0001>
module attributes {stable_mosaic.version = 11 : i64} {
  func.func @_cos_head_kernel(%arg0: i32, %arg1: i32, %arg2: i32, %arg3: memref<8x128xf32, #tpu.memory_space<vmem>>, %arg4: memref<128x128xf32, #tpu.memory_space<vmem>>, %arg5: memref<8x128xf32, #tpu.memory_space<vmem>>, %arg6: memref<8x128xf32, #tpu.memory_space<vmem>>, %arg7: memref<8x1xf32, #tpu.memory_space<vmem>>, %arg8: memref<1x128xf32, #tpu.memory_space<vmem>>) attributes {dimension_semantics = [#tpu.dimension_semantics<parallel>, #tpu.dimension_semantics<arbitrary>, #tpu.dimension_semantics<arbitrary>], iteration_bounds = array<i64: 1, 1, 1>, scalar_prefetch = 0 : i64, scratch_operands = 3 : i64, tpu.core_type = #tpu.core_type<tc>, window_params = [{transform_indices = @transform_0, window_bounds = array<i64: 8, 128>}, {transform_indices = @transform_1, window_bounds = array<i64: 128, 128>}, {transform_indices = @transform_2, window_bounds = array<i64: 8, 128>}]} {
    %c0_i32 = arith.constant 0 : i32
    %0 = arith.cmpi eq, %arg2, %c0_i32 : i32
    %1 = arith.extui %0 : i1 to i32
    %c0_i32_0 = arith.constant 0 : i32
    %2 = arith.cmpi ne, %1, %c0_i32_0 : i32
    scf.if %2 {
      %cst_21 = arith.constant 0.000000e+00 : f32
      %27 = vector.broadcast %cst_21 : f32 to vector<8x128xf32>
      %c0_22 = arith.constant 0 : index
      %c0_23 = arith.constant 0 : index
      %28 = vector.load %arg6[%c0_22, %c0_23] : memref<8x128xf32, #tpu.memory_space<vmem>>, vector<8x128xf32>
      tpu.vector_store %arg6[%c0_22, %c0_23], %27 {strides = array<i32>} : memref<8x128xf32, #tpu.memory_space<vmem>>, vector<8x128xf32>,
      %cst_24 = arith.constant 0.000000e+00 : f32
      %29 = vector.broadcast %cst_24 : f32 to vector<8x1xf32>
      %c0_25 = arith.constant 0 : index
      %c0_26 = arith.constant 0 : index
      %30 = vector.load %arg7[%c0_25, %c0_26] : memref<8x1xf32, #tpu.memory_space<vmem>>, vector<8x1xf32>
      tpu.vector_store %arg7[%c0_25, %c0_26], %29 {strides = array<i32>} : memref<8x1xf32, #tpu.memory_space<vmem>>, vector<8x1xf32>,
    } else {
    }
    %c0_i32_1 = arith.constant 0 : i32
    %3 = arith.cmpi eq, %arg2, %c0_i32_1 : i32
    %c0_i32_2 = arith.constant 0 : i32
    %4 = arith.cmpi eq, %arg1, %c0_i32_2 : i32
    %5 = arith.andi %3, %4 : i1
    %6 = arith.extui %5 : i1 to i32
    %c0_i32_3 = arith.constant 0 : i32
    %7 = arith.cmpi ne, %6, %c0_i32_3 : i32
    scf.if %7 {
      %cst_21 = arith.constant 0.000000e+00 : f32
      %27 = vector.broadcast %cst_21 : f32 to vector<1x128xf32>
      %c0_22 = arith.constant 0 : index
      %c0_23 = arith.constant 0 : index
      %28 = vector.load %arg8[%c0_22, %c0_23] : memref<1x128xf32, #tpu.memory_space<vmem>>, vector<1x128xf32>
      tpu.vector_store %arg8[%c0_22, %c0_23], %27 {strides = array<i32>} : memref<1x128xf32, #tpu.memory_space<vmem>>, vector<1x128xf32>,
    } else {
    }
    %c0 = arith.constant 0 : index
    %c0_4 = arith.constant 0 : index
    %8 = vector.load %arg3[%c0, %c0_4] : memref<8x128xf32, #tpu.memory_space<vmem>>, vector<8x128xf32>
    %c0_5 = arith.constant 0 : index
    %c0_6 = arith.constant 0 : index
    %9 = vector.load %arg4[%c0_5, %c0_6] : memref<128x128xf32, #tpu.memory_space<vmem>>, vector<128x128xf32>
    %cst = arith.constant 1.000000e+00 : f32
    %10 = vector.broadcast %cst : f32 to vector<1x128xf32>
    %c0_7 = arith.constant 0 : index
    %c0_8 = arith.constant 0 : index
    %11 = vector.load %arg7[%c0_7, %c0_8] : memref<8x1xf32, #tpu.memory_space<vmem>>, vector<8x1xf32>
    %12 = arith.mulf %8, %8 : vector<8x128xf32>
    %cst_9 = arith.constant dense<0.000000e+00> : vector<8xf32>
    %13 = vector.multi_reduction <add>, %12, %cst_9 [1] : vector<8x128xf32> to vector<8xf32>
    %14 = vector.shape_cast %13 : vector<8xf32> to vector<8x1xf32>
    %15 = arith.addf %11, %14 : vector<8x1xf32>
    %c0_10 = arith.constant 0 : index
    %c0_11 = arith.constant 0 : index
    %16 = vector.load %arg7[%c0_10, %c0_11] : memref<8x1xf32, #tpu.memory_space<vmem>>, vector<8x1xf32>
    tpu.vector_store %arg7[%c0_10, %c0_11], %15 {strides = array<i32>} : memref<8x1xf32, #tpu.memory_space<vmem>>, vector<8x1xf32>,
    %c0_i32_12 = arith.constant 0 : i32
    %17 = arith.cmpi eq, %arg1, %c0_i32_12 : i32
    %18 = arith.extui %17 : i1 to i32
    %c0_i32_13 = arith.constant 0 : i32
    %19 = arith.cmpi ne, %18, %c0_i32_13 : i32
    scf.if %19 {
      %c0_21 = arith.constant 0 : index
      %c0_22 = arith.constant 0 : index
      %27 = vector.load %arg8[%c0_21, %c0_22] : memref<1x128xf32, #tpu.memory_space<vmem>>, vector<1x128xf32>
      %28 = arith.mulf %9, %9 : vector<128x128xf32>
      %cst_23 = arith.constant dense<0.000000e+00> : vector<1x128xf32>
      %29 = tpu.matmul %10, %28, %cst_23 {dimension_numbers = #tpu.dot_dimension_numbers<[1], [1], [0], [0], [0, 0, 1, 0], [], []>} : vector<1x128xf32>, vector<128x128xf32>, vector<1x128xf32> -> vector<1x128xf32>
      %30 = arith.addf %27, %29 : vector<1x128xf32>
      %c0_24 = arith.constant 0 : index
      %c0_25 = arith.constant 0 : index
      %31 = vector.load %arg8[%c0_24, %c0_25] : memref<1x128xf32, #tpu.memory_space<vmem>>, vector<1x128xf32>
      tpu.vector_store %arg8[%c0_24, %c0_25], %30 {strides = array<i32>} : memref<1x128xf32, #tpu.memory_space<vmem>>, vector<1x128xf32>,
    } else {
    }
    %c0_14 = arith.constant 0 : index
    %c0_15 = arith.constant 0 : index
    %20 = vector.load %arg6[%c0_14, %c0_15] : memref<8x128xf32, #tpu.memory_space<vmem>>, vector<8x128xf32>
    %cst_16 = arith.constant dense<0.000000e+00> : vector<8x128xf32>
    %21 = tpu.matmul %8, %9, %cst_16 {dimension_numbers = #tpu.dot_dimension_numbers<[1], [1], [0], [0], [0, 0, 1, 0], [], []>} : vector<8x128xf32>, vector<128x128xf32>, vector<8x128xf32> -> vector<8x128xf32>
    %22 = arith.addf %20, %21 : vector<8x128xf32>
    %c0_17 = arith.constant 0 : index
    %c0_18 = arith.constant 0 : index
    %23 = vector.load %arg6[%c0_17, %c0_18] : memref<8x128xf32, #tpu.memory_space<vmem>>, vector<8x128xf32>
    tpu.vector_store %arg6[%c0_17, %c0_18], %22 {strides = array<i32>} : memref<8x128xf32, #tpu.memory_space<vmem>>, vector<8x128xf32>,
    %c0_i32_19 = arith.constant 0 : i32
    %24 = arith.cmpi eq, %arg2, %c0_i32_19 : i32
    %25 = arith.extui %24 : i1 to i32
    %c0_i32_20 = arith.constant 0 : i32
    %26 = arith.cmpi ne, %25, %c0_i32_20 : i32
    scf.if %26 {
      %c0_21 = arith.constant 0 : index
      %c0_22 = arith.constant 0 : index
      %27 = vector.load %arg7[%c0_21, %c0_22] : memref<8x1xf32, #tpu.memory_space<vmem>>, vector<8x1xf32>
      %cst_23 = arith.constant 1.000000e-24 : f32
      %28 = vector.broadcast %cst_23 : f32 to vector<8x1xf32>
      %29 = arith.maximumf %27, %28 : vector<8x1xf32>
      %30 = math.rsqrt %29 : vector<8x1xf32>
      %c0_24 = arith.constant 0 : index
      %c0_25 = arith.constant 0 : index
      %31 = vector.load %arg8[%c0_24, %c0_25] : memref<1x128xf32, #tpu.memory_space<vmem>>, vector<1x128xf32>
      %cst_26 = arith.constant 1.000000e-24 : f32
      %32 = vector.broadcast %cst_26 : f32 to vector<1x128xf32>
      %33 = arith.maximumf %31, %32 : vector<1x128xf32>
      %34 = math.rsqrt %33 : vector<1x128xf32>
      %cst_27 = arith.constant 3.000000e+01 : f32
      %35 = vector.broadcast %cst_27 : f32 to vector<8x1xf32>
      %36 = arith.mulf %35, %30 : vector<8x1xf32>
      %c0_28 = arith.constant 0 : index
      %c0_29 = arith.constant 0 : index
      %37 = vector.load %arg6[%c0_28, %c0_29] : memref<8x128xf32, #tpu.memory_space<vmem>>, vector<8x128xf32>
      %38 = vector.broadcast %36 : vector<8x1xf32> to vector<8x128xf32>
      %39 = arith.mulf %38, %37 : vector<8x128xf32>
      %40 = vector.broadcast %34 : vector<1x128xf32> to vector<8x128xf32>
      %41 = arith.mulf %39, %40 : vector<8x128xf32>
      %c0_30 = arith.constant 0 : index
      %c0_31 = arith.constant 0 : index
      %42 = vector.load %arg5[%c0_30, %c0_31] : memref<8x128xf32, #tpu.memory_space<vmem>>, vector<8x128xf32>
      tpu.vector_store %arg5[%c0_30, %c0_31], %41 {strides = array<i32>} : memref<8x128xf32, #tpu.memory_space<vmem>>, vector<8x128xf32>,
    } else {
    }
    return
  }
  func.func @transform_0(%arg0: i32, %arg1: i32, %arg2: i32) -> (i32, i32) {
    %c0_i32 = arith.constant 0 : i32
    return %arg1, %arg2 : i32, i32
  }
  func.func @transform_1(%arg0: i32, %arg1: i32, %arg2: i32) -> (i32, i32) {
    %c0_i32 = arith.constant 0 : i32
    return %arg0, %arg2 : i32, i32
  }
  func.func @transform_2(%arg0: i32, %arg1: i32, %arg2: i32) -> (i32, i32) {
    %c0_i32 = arith.constant 0 : i32
    return %arg1, %arg0 : i32, i32
  }
}

</mosaic_0001>

<llo_original>
// kernel: tpu_custom_call.1
$region0: #{tpu_custom_call.1}
  #allocation0 [shape = 'u32[]', space=smem, size = 0x4, offset = 0x4, fixed_abs, tag = 'smem constant byte address 0x4 - core index']
  #allocation1 [shape = 'u32[72,128]{1,0:T(1,128)}', space=vmem, size = 0x9000, scoped, tag = 'internal scratch']
  #allocation2 [shape = 'f32[8,128]{1,0:T(8,128)}', space=vmem, size = 0x1000, scoped, tag = 'scratch operand']
  #allocation3 [shape = 'f32[8,1]{1,0:T(8,128)}', space=vmem, size = 0x1000, scoped, tag = 'scratch operand']
  #allocation4 [shape = 'f32[1,128]{1,0:T(1,128)}', space=vmem, size = 0x200, scoped, tag = 'scratch operand']
  %s0 = inlined_call_operand.hbm [shape: f32[8,128], index: 0, kind: input, shape index: {}]
  %s1 = inlined_call_operand.hbm [shape: f32[128,128], index: 1, kind: input, shape index: {}]
  %s2 = inlined_call_operand.hbm [shape: f32[8,128], index: 2, kind: output, shape index: {}]
  %s3 = sld [smem:[#allocation0]]
  $region42: #{tpu_custom_call.1} parent=0
    _
  %s5 = ssub.s32 1, %s3
  %s6 = scalar_select 0, %s5, %s3
  $region1: #{tpu_custom_call.1} parent=0
    #allocation5 [shape = 'u8[4096]{0}', space=vmem, size = 0x1000, scoped, tag = 'input window, operand 0, single buffered']
    #allocation6 [shape = 's32[1]{0}', space=sflag, size = 0x4, scoped, tag = 'scoped memory for tpu_custom_call.1']
    #allocation7 [shape = 's32[1]{0}', space=sflag, size = 0x4, scoped, tag = 'scoped memory for tpu_custom_call.1']
    #allocation8 [shape = 'u8[65536]{0}', space=vmem, size = 0x10000, scoped, tag = 'input window, operand 1, single buffered']
    #allocation9 [shape = 's32[1]{0}', space=sflag, size = 0x4, scoped, tag = 'scoped memory for tpu_custom_call.1']
    #allocation10 [shape = 'u8[4096]{0}', space=vmem, size = 0x1000, scoped, tag = 'output window, operand 0, single buffered']
    %7 = vsyncpa [#allocation6], 0
    %8 = vsyncpa [#allocation9], 0
    %9 = vsyncpa [#allocation7], 0
    // Predicated region
    $region2: #{tpu_custom_call.1} parent=1 // pred_check
      _
    $region3: #{tpu_custom_call.1} parent=1 // pred_check_branch
      %11 = sbr.rel (0) target = $region5
    $region4: #{tpu_custom_call.1} parent=1 // pred_region
      %13 = vsyncadd [#allocation6], 0
      %s15 = sshll.u32 %s0, 4
      %s16 = int_to_ptr.hbm [resolvable:$true] %s15
      %s17 = sshll.u32 [#allocation5], 4
      %s18 = int_to_ptr.vmem [resolvable:$true] %s17
      %20 = dma.hbm_to_vmem [thread:$0]  %s16, 128, %s18, [#allocation6]
    $region5: #{tpu_custom_call.1} parent=1 // pred_fallthru
      _
    // Predicated region
    $region6: #{tpu_custom_call.1} parent=1 // pred_check
      _
    $region7: #{tpu_custom_call.1} parent=1 // pred_check_branch
      %22 = sbr.rel (0) target = $region9
    $region8: #{tpu_custom_call.1} parent=1 // pred_region
      %24 = vsyncadd [#allocation9], 0
      %s25 = sshll.u32 %s1, 4
      %s26 = int_to_ptr.hbm [resolvable:$true] %s25
      %s27 = sshll.u32 [#allocation8], 4
      %s28 = int_to_ptr.vmem [resolvable:$true] %s27
      %33 = dma.hbm_to_vmem [thread:$0]  %s26, 2048, %s28, [#allocation9], 128, 128, 8
    $region9: #{tpu_custom_call.1} parent=1 // pred_fallthru
      _
    // Predicated region
    $region10: #{tpu_custom_call.1} parent=1 // pred_check
      _
    $region11: #{tpu_custom_call.1} parent=1 // pred_check_branch
      %35 = sbr.rel (0) target = $region13
    $region12: #{tpu_custom_call.1} parent=1 // pred_region
      %37 = dma.done [#allocation6], 128
    $region13: #{tpu_custom_call.1} parent=1 // pred_fallthru
      _
    // Predicated region
    $region14: #{tpu_custom_call.1} parent=1 // pred_check
      _
    $region15: #{tpu_custom_call.1} parent=1 // pred_check_branch
      %39 = sbr.rel (0) target = $region17
    $region16: #{tpu_custom_call.1} parent=1 // pred_region
      %41 = dma.done [#allocation9], 2048
    $region17: #{tpu_custom_call.1} parent=1 // pred_fallthru
      _
    %p42 = scmp.eq.s32.totalorder 0, 0
    // Predicated region
    $region18: #{tpu_custom_call.1} parent=1 // pred_check
      %p43 = pneg %p42
    $region19: #{tpu_custom_call.1} parent=1 // pred_check_branch
      %45 = sbr.rel (%p43) target = $region21
    $region20: #{tpu_custom_call.1} parent=1 // pred_region
      %46 = vst [vmem:[#allocation2] sm:$0xff] 0.0
      %vm47 = vcmask 7168
      %48 = vst.msk [vmem:[#allocation3] sm:$0xff] %vm47, 0.0
    $region21: #{tpu_custom_call.1} parent=1 // pred_fallthru
      _
    %p49 = scmp.eq.s32.totalorder 0, 0
    %p50 = pnand %p42, %p49
    %p51 = pneg %p50
    // Predicated region
    $region22: #{tpu_custom_call.1} parent=1 // pred_check
      _
    $region23: #{tpu_custom_call.1} parent=1 // pred_check_branch
      %53 = sbr.rel (%p50) target = $region25
    $region24: #{tpu_custom_call.1} parent=1 // pred_region
      %54 = vst [vmem:[#allocation4] sm:$0x1] 0.0
    $region25: #{tpu_custom_call.1} parent=1 // pred_fallthru
      _
    %v55 = vld [vmem:[#allocation5] sm:$0xff]
    %v56 = vld [vmem:[#allocation8] sm:$0xff]
    %v57 = vld [vmem:[#allocation8 + $0x8] sm:$0xff]
    %v58 = vld [vmem:[#allocation8 + $0x10] sm:$0xff]
    %v59 = vld [vmem:[#allocation8 + $0x18] sm:$0xff]
    %v60 = vld [vmem:[#allocation8 + $0x20] sm:$0xff]
    %v61 = vld [vmem:[#allocation8 + $0x28] sm:$0xff]
    %v62 = vld [vmem:[#allocation8 + $0x30] sm:$0xff]
    %v63 = vld [vmem:[#allocation8 + $0x38] sm:$0xff]
    %v64 = vld [vmem:[#allocation8 + $0x40] sm:$0xff]
    %v65 = vld [vmem:[#allocation8 + $0x48] sm:$0xff]
    %v66 = vld [vmem:[#allocation8 + $0x50] sm:$0xff]
    %v67 = vld [vmem:[#allocation8 + $0x58] sm:$0xff]
    %v68 = vld [vmem:[#allocation8 + $0x60] sm:$0xff]
    %v69 = vld [vmem:[#allocation8 + $0x68] sm:$0xff]
    %v70 = vld [vmem:[#allocation8 + $0x70] sm:$0xff]
    %v71 = vld [vmem:[#allocation8 + $0x78] sm:$0xff]
    %v72 = vld [vmem:[#allocation3] sm:$0xff]
    %v73 = vmul.f32 %v55, %v55
    %74 = vadd.xlane.f32.xlu0 %v73
    %v75 = vpop.xlane.xlu0 %74
    %v76 = vadd.f32 %v72, %v75
    %vm77 = vcmask 7168
    %78 = vst.msk [vmem:[#allocation3] sm:$0xff] %vm77, %v76
    // Predicated region
    $region26: #{tpu_custom_call.1} parent=1 // pred_check
      %p79 = pneg %p49
    $region27: #{tpu_custom_call.1} parent=1 // pred_check_branch
      %81 = sbr.rel (%p79) target = $region29
    $region28: #{tpu_custom_call.1} parent=1 // pred_region
      %v82 = vld [vmem:[#allocation4] sm:$0x1]
      %v83 = vmul.f32 %v56, %v56
      %v84 = vmul.f32 %v57, %v57
      %v85 = vmul.f32 %v58, %v58
      %v86 = vmul.f32 %v59, %v59
      %v87 = vmul.f32 %v60, %v60
      %v88 = vmul.f32 %v61, %v61
      %v89 = vmul.f32 %v62, %v62
      %v90 = vmul.f32 %v63, %v63
      %v91 = vmul.f32 %v64, %v64
      %v92 = vmul.f32 %v65, %v65
      %v93 = vmul.f32 %v66, %v66
      %v94 = vmul.f32 %v67, %v67
      %v95 = vmul.f32 %v68, %v68
      %v96 = vmul.f32 %v69, %v69
      %v97 = vmul.f32 %v70, %v70
      %v98 = vmul.f32 %v71, %v71
      %99 = vmatpush.xpose.msra.mxu0 %v98
      %100 = vmatpush.xpose.msra.mxu0 %v97
      %101 = vmatpush.xpose.msra.mxu0 %v96
      %102 = vmatpush.xpose.msra.mxu0 %v95
      %103 = vmatpush.xpose.msra.mxu0 %v94
      %104 = vmatpush.xpose.msra.mxu0 %v93
      %105 = vmatpush.xpose.msra.mxu0 %v92
      %106 = vmatpush.xpose.msra.mxu0 %v91
      %107 = vmatpush.xpose.msra.mxu0 %v90
      %108 = vmatpush.xpose.msra.mxu0 %v89
      %109 = vmatpush.xpose.msra.mxu0 %v88
      %110 = vmatpush.xpose.msra.mxu0 %v87
      %111 = vmatpush.xpose.msra.mxu0 %v86
      %112 = vmatpush.xpose.msra.mxu0 %v85
      %113 = vmatpush.xpose.msra.mxu0 %v84
      %114 = vmatpush.xpose.msra.mxu0 %v83
      %115 = vmatmul.f32.gmra.mxu0 1.0
      %v116 = vpop.f32.mrf.mxu0
      %v117 = vadd.f32 0.0, %v116
      %118 = vdwg.mxu0
      %v119 = vadd.f32 %v82, %v117
      %120 = vst [vmem:[#allocation4] sm:$0x1] %v119
    $region29: #{tpu_custom_call.1} parent=1 // pred_fallthru
      _
    %v121 = vld [vmem:[#allocation2] sm:$0xff]
    %122 = vmatpush.xpose.msra.mxu0 %v71
    %123 = vmatpush.xpose.msra.mxu0 %v70
    %124 = vmatpush.xpose.msra.mxu0 %v69
    %125 = vmatpush.xpose.msra.mxu0 %v68
    %126 = vmatpush.xpose.msra.mxu0 %v67
    %127 = vmatpush.xpose.msra.mxu0 %v66
    %128 = vmatpush.xpose.msra.mxu0 %v65
    %129 = vmatpush.xpose.msra.mxu0 %v64
    %130 = vmatpush.xpose.msra.mxu0 %v63
    %131 = vmatpush.xpose.msra.mxu0 %v62
    %132 = vmatpush.xpose.msra.mxu0 %v61
    %133 = vmatpush.xpose.msra.mxu0 %v60
    %134 = vmatpush.xpose.msra.mxu0 %v59
    %135 = vmatpush.xpose.msra.mxu0 %v58
    %136 = vmatpush.xpose.msra.mxu0 %v57
    %137 = vmatpush.xpose.msra.mxu0 %v56
    %138 = vmatmul.f32.gmra.mxu0 %v55
    %v139 = vpop.f32.mrf.mxu0
    %v140 = vadd.f32 0.0, %v139
    %141 = vdwg.mxu0
    %v142 = vadd.f32 %v121, %v140
    %143 = vst [vmem:[#allocation2] sm:$0xff] %v142
    // Predicated region
    $region30: #{tpu_custom_call.1} parent=1 // pred_check
      %p144 = pneg %p42
    $region31: #{tpu_custom_call.1} parent=1 // pred_check_branch
      %146 = sbr.rel (%p144) target = $region33
    $region32: #{tpu_custom_call.1} parent=1 // pred_region
      %v147 = vld [vmem:[#allocation3] sm:$0xff]
      %v148 = vmax.f32 %v147, 1e-24
      %v149 = vrsqrt.pop %v148
      %v150 = vmul.f32 %v149, %v148
      %v151 = vmul.f32 %v150, %v149
      %v152 = vmul.f32 0.5, %v151
      %v153 = vsub.f32 1.5, %v152
      %v154 = vmul.f32 %v149, %v153
      %vm155 = vweird.f32 %v148
      %vm156 = vweird.f32 %v149
      %vm157 = vmor %vm155, %vm156
      %v158 = vsel %vm157, %v149, %v154
      %v159 = vld [vmem:[#allocation4] sm:$0x1]
      %v160 = vmax.f32 %v159, 1e-24
      %v161 = vrsqrt.pop %v160
      %v162 = vmul.f32 %v161, %v160
      %v163 = vmul.f32 %v162, %v161
      %v164 = vmul.f32 0.5, %v163
      %v165 = vsub.f32 1.5, %v164
      %v166 = vmul.f32 %v161, %v165
      %vm167 = vweird.f32 %v160
      %vm168 = vweird.f32 %v161
      %vm169 = vmor %vm167, %vm168
      %v170 = vsel %vm169, %v161, %v166
      %v171 = vmul.f32 %v158, 30.0
      %v172 = vld [vmem:[#allocation2] sm:$0xff]
      %174 = vset.pattern.permute.xlu0 0
      %175 = vperm.xlu0 %174, %v171
      %v176 = vpop.permute.xlu0 %175
      %v178 = vmul.f32 %v176, %v172
      %v180 = vperm.slane %v170, 0
      %v182 = vmul.f32 %v178, %v180
      %183 = vst [vmem:[#allocation10] sm:$0xff] %v182
    $region33: #{tpu_custom_call.1} parent=1 // pred_fallthru
      _
    // Predicated region
    $region34: #{tpu_custom_call.1} parent=1 // pred_check
      _
    $region35: #{tpu_custom_call.1} parent=1 // pred_check_branch
      %185 = sbr.rel (0) target = $region37
    $region36: #{tpu_custom_call.1} parent=1 // pred_region
      %187 = vsyncadd [#allocation7], 0
      %s189 = sshll.u32 [#allocation10], 4
      %s190 = int_to_ptr.vmem [resolvable:$true] %s189
      %s191 = sshll.u32 %s2, 4
      %s192 = int_to_ptr.hbm [resolvable:$true] %s191
      %194 = dma.vmem_to_hbm [thread:$0]  %s190, 128, %s192, [#allocation7]
    $region37: #{tpu_custom_call.1} parent=1 // pred_fallthru
      _
    // Predicated region
    $region38: #{tpu_custom_call.1} parent=1 // pred_check
      _
    $region39: #{tpu_custom_call.1} parent=1 // pred_check_branch
      %196 = sbr.rel (0) target = $region41
    $region40: #{tpu_custom_call.1} parent=1 // pred_region
      %198 = dma.done [#allocation7], 128
    $region41: #{tpu_custom_call.1} parent=1 // pred_fallthru
      _
    %199 = vsyncpa [#allocation6], 1
    %200 = vsyncpa [#allocation9], 1
    %201 = vsyncpa [#allocation7], 1

</llo_original>
